<compile_context>
chip_gen: v6e
topology: v6e:2x2x1
jax: 0.10.0
libtpu: 0.0.40
codegen_flags: <defaults>
</compile_context>

<pallas_src>
import numpy as np
import jax
import jax.numpy as jnp
from jax.experimental import pallas as pl
from jax.experimental.pallas import tpu as pltpu


# ---------------------------------------------------------------------------
# glue helpers (pure JAX / numpy: mask resize, constants, weight preparation)
# ---------------------------------------------------------------------------
def _resize_bilinear_align_corners(x, out_hw):
    """F.interpolate(x, size=out_hw, mode='bilinear', align_corners=True), NCHW."""
    B, C, H, W = x.shape
    OH, OW = out_hw
    if (H, W) == (OH, OW):
        return x

    def axis(n_in, n_out):
        if n_in == 1 or n_out == 1:
            z = jnp.zeros((n_out,), jnp.int32)
            return z, z, jnp.zeros((n_out,), jnp.float32)
        src = jnp.arange(n_out, dtype=jnp.float32) * ((n_in - 1) / (n_out - 1))
        lo = jnp.clip(jnp.floor(src).astype(jnp.int32), 0, n_in - 2)
        return lo, lo + 1, src - lo.astype(jnp.float32)

    hlo, hhi, hf = axis(H, OH)
    wlo, whi, wf = axis(W, OW)
    top = (x[:, :, hlo, :] * (1.0 - hf)[None, None, :, None]
           + x[:, :, hhi, :] * hf[None, None, :, None])
    out = (top[:, :, :, wlo] * (1.0 - wf)[None, None, None, :]
           + top[:, :, :, whi] * wf[None, None, None, :])
    return out


def _spectral_normalize(w, n_iter=20):
    """weight / sigma_max(weight.reshape(out, -1)) -- the SpectralNorm reparam."""
    # TODO(synk): PyTorch's SpectralNorm keeps a persistent, randomly
    # initialised power-iteration vector `u`; here a deterministic power
    # iteration is used instead (same mathematical reparameterisation).
    wm = w.reshape(w.shape[0], -1).astype(jnp.float32)
    v = jnp.ones((wm.shape[1],), jnp.float32) / jnp.sqrt(jnp.float32(wm.shape[1]))
    u = jnp.ones((wm.shape[0],), jnp.float32) / jnp.sqrt(jnp.float32(wm.shape[0]))
    for _ in range(n_iter):
        u = wm @ v
        u = u / (jnp.linalg.norm(u) + 1e-12)
        v = wm.T @ u
        v = v / (jnp.linalg.norm(v) + 1e-12)
    sigma = u @ (wm @ v)
    return (w / sigma).astype(w.dtype)


def _tap_masks_np(H, W, dilations):
    """(len(dilations)*9, H*W) f32 validity masks implementing zero 'same'
    padding of a 3x3 conv on the lane-flattened (Cin, H*W) activation."""
    hh, ww = np.meshgrid(np.arange(H), np.arange(W), indexing="ij")
    hh = hh.reshape(-1)
    ww = ww.reshape(-1)
    rows = []
    for d in dilations:
        for kh in range(3):
            for kw in range(3):
                oh, ow = (kh - 1) * d, (kw - 1) * d
                valid = ((hh + oh >= 0) & (hh + oh < H)
                         & (ww + ow >= 0) & (ww + ow < W))
                rows.append(valid.astype(np.float32))
    return np.stack(rows, axis=0)


def _dts_expand_np(k, H2, W2):
    """(k*k, H2*W2, H1*W1) exact 0/1 selection matrices: plane (kh,kw) of the
    attended patches scatters to output lanes (h2*k+kh)*W1 + w2*k+kw.
    Depth-to-space (pixel shuffle) becomes k*k tiny matmuls on the
    VMEM-resident bmm result, so no XLA transpose / HBM round-trip is needed.
    TODO(synk): for production H1*W1 these matrices grow as M*HW and the HW
    axis would have to be tiled together with the activations."""
    W1 = W2 * k
    M = H2 * W2
    HW = H2 * k * W1
    E = np.zeros((k * k, M, HW), np.float32)
    h2 = np.arange(H2)[:, None]
    w2 = np.arange(W2)[None, :]
    m = (h2 * W2 + w2).reshape(-1)
    for kh in range(k):
        for kw in range(k):
            l = ((h2 * k + kh) * W1 + w2 * k + kw).reshape(-1)
            E[kh * k + kw, m, l] = 1.0
    return E


# ---------------------------------------------------------------------------
# pltpu.roll direction probe (cached).  +1 means pltpu.roll == jnp.roll,
# i.e. out[i] = x[(i - shift) % L]; -1 means the opposite convention.
# Costs one tiny compile; guarantees the tap-shift sign is right on any
# jax/Mosaic version.
# ---------------------------------------------------------------------------
_ROLL_SIGN = None


def _roll_probe_kernel(x_ref, o_ref):
    o_ref[...] = pltpu.roll(x_ref[...], 1, 1)


def _get_roll_sign():
    global _ROLL_SIGN
    if _ROLL_SIGN is None:
        x = jax.lax.broadcasted_iota(jnp.float32, (8, 128), 1)
        y = pl.pallas_call(
            _roll_probe_kernel,
            out_shape=jax.ShapeDtypeStruct((8, 128), jnp.float32),
        )(x)
        _ROLL_SIGN = 1 if int(y[0, 1]) == 0 else -1
    return _ROLL_SIGN


# ---------------------------------------------------------------------------
# weight preparation (input-independent: spectral norm, im2col relayout,
# block-diagonal merge of the grouped branches, conv2+shortcut K-fusion).
# Call ONCE and reuse across forward passes (hoists the 20-step power
# iteration and all relayouts out of the step).
# ---------------------------------------------------------------------------
def prepare_atn_weights(params, *, groups=4, compute_dtype=jnp.float32,
                        n_power_iter=20):
    G = groups
    bw = params["branch_w"]
    assert len(bw) == G
    OCg, C = int(bw[0].shape[0]), int(bw[0].shape[1])
    OC = OCg * G

    # merged block-diagonal branch weight (OC, G*9*C); column order [g, tap, cin]
    wbr = jnp.zeros((OC, G * 9 * C), jnp.float32)
    for g in range(G):
        wg = jnp.transpose(bw[g], (0, 2, 3, 1)).reshape(OCg, 9 * C)
        wbr = wbr.at[g * OCg:(g + 1) * OCg,
                     g * 9 * C:(g + 1) * 9 * C].set(wg.astype(jnp.float32))
    bbr = jnp.concatenate([params["branch_b"][g] for g in range(G)]).reshape(OC, 1)

    w1 = _spectral_normalize(params["w1"], n_power_iter)
    w1m = jnp.transpose(w1, (0, 2, 3, 1)).reshape(w1.shape[0], 9 * w1.shape[1])
    w2 = _spectral_normalize(params["w2"], n_power_iter)
    w2m = jnp.transpose(w2, (0, 2, 3, 1)).reshape(w2.shape[0], 9 * w2.shape[1])
    wsc = _spectral_normalize(params["wsc"], n_power_iter).reshape(w2.shape[0], -1)
    # conv2 and 1x1 shortcut fused along K: [w2 | wsc], bias b2 + bsc
    w2sc = jnp.concatenate([w2m, wsc], axis=1)
    b2sc = (params["b2"] + params["bsc"]).reshape(-1, 1)

    return {
        "compute_dtype": compute_dtype,
        "alpha": jnp.asarray(params["alpha"], jnp.float32),
        "OC": OC,
        "wbr": wbr.astype(compute_dtype),
        "bbr": bbr.astype(jnp.float32),
        "w1": w1m.astype(compute_dtype),
        "b1": params["b1"].reshape(-1, 1).astype(jnp.float32),
        "w2sc": w2sc.astype(compute_dtype),
        "b2sc": b2sc.astype(jnp.float32),
    }


# ---------------------------------------------------------------------------
# the single fused Pallas kernel (one grid step per batch image)
# ---------------------------------------------------------------------------
def _make_fused_kernel(*, C, HW, W, kk, G, dil_all, gdix, d1_idx,
                       compute_dtype, roll_sign):
    cdt = compute_dtype

    def kernel(rawp_ref, score_ref, x1_ref, m2_ref, x_ref, dts_ref, tmask_ref,
               wbr_ref, bbr_ref, w1_ref, b1_ref, w2sc_ref, b2sc_ref,
               o_ref, col_ref):
        f32 = jnp.float32

        def leaky(v, slope):
            return jnp.where(v >= 0, v, slope * v)

        def mm(a, b):
            return jax.lax.dot_general(
                a, b, dimension_numbers=(((1,), (0,)), ((), ())),
                preferred_element_type=f32)

        def write_taps(act, dil, mask_base, row0):
            # zero-padded 'same' 3x3 conv taps with dilation `dil` on a
            # lane-flat (Cin, HW) activation: 9 XLU lane rolls * precomputed
            # boundary masks, written straight into the im2col scratch rows
            # [row0, row0 + 9*Cin)  (no jnp.concatenate staging copy).
            cin = act.shape[0]
            for t in range(9):
                kh, kw = divmod(t, 3)
                s = ((kh - 1) * W + (kw - 1)) * dil       # lane offset of tap
                if t == 4:                                # centre: no shift/mask
                    tap = act
                else:
                    amt = ((-s) if roll_sign > 0 else s) % HW
                    tap = pltpu.roll(act, amt, 1) if amt else act
                    tap = tap * tmask_ref[mask_base + t:mask_base + t + 1, :]
                col_ref[row0 + t * cin:row0 + (t + 1) * cin, :] = tap.astype(cdt)

        # -- 1. attention application: yb = patches @ score    (K = N)
        yb = mm(rawp_ref[0].astype(cdt), score_ref[0].astype(cdt))   # (kk*C, M) f32

        # -- 2. depth-to-space on the VMEM-resident result via kk exact 0/1
        #       selection matmuls (kept in f32: pure placement, no rounding).
        yrec = mm(yb[0:C, :], dts_ref[0])
        for j in range(1, kk):
            yrec = yrec + mm(yb[j * C:(j + 1) * C, :], dts_ref[j])   # (C, HW)

        # -- 3. blend  y = x1*m + alpha*yrec*(1-m)  (alpha folded into m2[1])
        m2 = m2_ref[0]
        y = x1_ref[0].astype(f32) * m2[0:1, :] + yrec * m2[1:2, :]

        # -- 4. branches: LeakyReLU(0.1) -> merged grouped dilated 3x3 conv
        #       (single MXU contraction against the block-diagonal weight)
        # TODO(synk): on v7x one could instead issue 9 accumulating matmuls
        # (MRB) and skip the materialised im2col; kept single-contraction
        # here since that variant loses on v5e/v6e (MRF pop + add).
        a_br = leaky(y, 0.1)
        for g in range(G):
            write_taps(a_br, dil_all[gdix[g]], gdix[g] * 9, g * 9 * C)
        ybr = mm(wbr_ref[...].astype(cdt), col_ref[0:G * 9 * C, :]) + bbr_ref[...]

        # -- 5. ResBlock on concat([x, y_branches])  (norm_layer=None)
        cat = jnp.concatenate([x_ref[0].astype(f32), ybr], axis=0)   # (2C, HW)
        a1 = leaky(cat, 0.01)
        write_taps(a1, 1, d1_idx * 9, 0)
        h1 = mm(w1_ref[...].astype(cdt), col_ref[0:9 * cat.shape[0], :]) + b1_ref[...]
        a2 = leaky(h1, 0.01)
        # conv2 + 1x1 shortcut fused into one matmul along K:
        #   [w2 | wsc] @ [im2col(a2) ; cat]   (+ b2 + bsc)
        write_taps(a2, 1, d1_idx * 9, 0)
        col_ref[9 * C:9 * C + cat.shape[0], :] = cat.astype(cdt)
        out = mm(w2sc_ref[...].astype(cdt),
                 col_ref[0:9 * C + cat.shape[0], :]) + b2sc_ref[...]
        o_ref[0] = out.astype(o_ref.dtype)

    return kernel


# ---------------------------------------------------------------------------
# wrapper: AtnConv.forward
# ---------------------------------------------------------------------------
def atn_conv_forward(x1, x2, x, mask, score, prepped, *, ksize=3, stride=1,
                     rates=(1, 2, 4, 8), groups=4):
    """Returns (out, attn_mask) matching AtnConv.forward (default config).
    `prepped` comes from prepare_atn_weights() (computed once, reused)."""
    B, C, H1, W1 = x1.shape
    H2, W2 = x2.shape[2], x2.shape[3]
    HW = H1 * W1
    cdt = prepped["compute_dtype"]

    # mask -> x1 resolution (bilinear, align_corners=True)  [tiny XLA glue]
    mask_r = _resize_bilinear_align_corners(mask.astype(jnp.float32), (H1, W1))

    # patch extraction: free reshape/transpose relayout, plane-major rows
    if ksize == 1:
        kpatch, rate = 1, 1
    else:
        rate = W1 // W2
        kpatch = rate
    step = stride * rate
    # TODO(synk): only the module's default non-overlapping case
    # (kernel == stride*rate) is implemented; overlapping patch extraction
    # would need an in-kernel gather.
    assert kpatch == step, "overlapping patch extraction not supported"
    assert H1 == H2 * kpatch and W1 == W2 * kpatch
    hb, wb = H1 // step, W1 // step
    N = hb * wb
    kk = kpatch * kpatch
    M = score.shape[2]
    assert score.shape[1] == N and M == H2 * W2

    p = x1.reshape(B, C, hb, kpatch, wb, kpatch)
    p = jnp.transpose(p, (0, 3, 5, 1, 2, 4))                 # (B, kh, kw, C, hb, wb)
    rawp = p.reshape(B, kk * C, N)                           # native dtype, no upcast

    # alpha folded into the blend weights: m2 = [mask, alpha*(1-mask)]
    m_f = mask_r.reshape(B, 1, HW)
    m2 = jnp.concatenate([m_f, prepped["alpha"] * (1.0 - m_f)], axis=1)

    x1_f = x1.reshape(B, C, HW)                              # native dtype
    Cx = x.shape[1]
    OC = prepped["OC"]
    assert Cx + OC == 2 * C, "concat([x, y]) must have 2*input_channels channels"
    x_f = x.reshape(B, Cx, HW)                               # native dtype

    # constants: depth-to-space selection matrices + dedup'd boundary masks
    dil_all = []
    for d in rates[:groups]:
        if d not in dil_all:
            dil_all.append(d)
    if 1 not in dil_all:
        dil_all.append(1)
    gdix = tuple(dil_all.index(rates[g]) for g in range(groups))
    d1_idx = dil_all.index(1)
    tap_masks = jnp.asarray(_tap_masks_np(H1, W1, dil_all), jnp.float32)
    dts = jnp.asarray(_dts_expand_np(kpatch, H2, W2), jnp.float32)   # (kk, M, HW)

    fused = _make_fused_kernel(
        C=C, HW=HW, W=W1, kk=kk, G=groups, dil_all=tuple(dil_all), gdix=gdix,
        d1_idx=d1_idx, compute_dtype=cdt, roll_sign=_get_roll_sign())

    # shared im2col VMEM scratch (max rows over the three contractions)
    R = max(groups * 9 * C, 9 * 2 * C, 9 * C + 2 * C)

    flops = int(2 * B * (kk * C * N * M                 # attention bmm
                         + kk * C * M * HW              # depth-to-space
                         + OC * groups * 9 * C * HW     # merged branches
                         + C * 9 * 2 * C * HW           # ResBlock conv1
                         + C * (9 * C + 2 * C) * HW))   # conv2 + shortcut
    operands = [rawp, score, x1_f, m2, x_f, dts, tap_masks,
                prepped["wbr"], prepped["bbr"], prepped["w1"], prepped["b1"],
                prepped["w2sc"], prepped["b2sc"]]
    bytes_accessed = int(sum(int(a.size) * a.dtype.itemsize for a in operands)
                         + B * C * HW * x1.dtype.itemsize)

    # TODO(synk): production image sizes (and v7x's 64 MiB VMEM) need a second
    # parallel grid axis tiling HW (with max_dilation*W halos and per-tile
    # masks); one whole image per grid step is fine at these shapes and also
    # what keeps B>=2 busy on both v7x TensorCores.
    out_f = pl.pallas_call(
        fused,
        out_shape=jax.ShapeDtypeStruct((B, C, HW), x1.dtype),
        grid_spec=pltpu.PrefetchScalarGridSpec(
            num_scalar_prefetch=0,
            grid=(B,),
            in_specs=[
                pl.BlockSpec((1, kk * C, N), lambda b: (b, 0, 0)),   # patches
                pl.BlockSpec((1, N, M), lambda b: (b, 0, 0)),        # score
                pl.BlockSpec((1, C, HW), lambda b: (b, 0, 0)),       # x1
                pl.BlockSpec((1, 2, HW), lambda b: (b, 0, 0)),       # blend wts
                pl.BlockSpec((1, Cx, HW), lambda b: (b, 0, 0)),      # x
                pl.BlockSpec((kk, M, HW), lambda b: (0, 0, 0)),      # d2s select
                pl.BlockSpec(tap_masks.shape, lambda b: (0, 0)),     # boundary masks
                pl.BlockSpec(prepped["wbr"].shape, lambda b: (0, 0)),
                pl.BlockSpec(prepped["bbr"].shape, lambda b: (0, 0)),
                pl.BlockSpec(prepped["w1"].shape, lambda b: (0, 0)),
                pl.BlockSpec(prepped["b1"].shape, lambda b: (0, 0)),
                pl.BlockSpec(prepped["w2sc"].shape, lambda b: (0, 0)),
                pl.BlockSpec(prepped["b2sc"].shape, lambda b: (0, 0)),
            ],
            out_specs=pl.BlockSpec((1, C, HW), lambda b: (b, 0, 0)),
            scratch_shapes=[pltpu.VMEM((R, HW), cdt)],
        ),
        compiler_params=pltpu.CompilerParams(
            dimension_semantics=("parallel",),
            vmem_limit_bytes=32 * 1024 * 1024),
        cost_estimate=pl.CostEstimate(
            flops=flops, transcendentals=0, bytes_accessed=bytes_accessed),
    )(rawp, score, x1_f, m2, x_f, dts, tap_masks,
      prepped["wbr"], prepped["bbr"], prepped["w1"], prepped["b1"],
      prepped["w2sc"], prepped["b2sc"])

    out = out_f.reshape(B, C, H1, W1)          # free reshape, no HBM transpose
    attn_mask = 0
    return out, attn_mask


# ---------------------------------------------------------------------------
# pure-JAX reference (mirrors the PyTorch forward)
# ---------------------------------------------------------------------------
def _reference(x1, x2, x, mask, score, params, *, ksize=3, stride=1,
               rates=(1, 2, 4, 8), groups=4):
    B, C, H1, W1 = x1.shape
    H2, W2 = x2.shape[2], x2.shape[3]
    mask_r = _resize_bilinear_align_corners(mask.astype(jnp.float32), (H1, W1))
    if ksize == 1:
        kpatch, rate = 1, 1
    else:
        rate = W1 // W2
        kpatch = rate
    step = stride * rate
    hb, wb = H1 // step, W1 // step
    N = hb * wb
    p = x1.reshape(B, C, hb, kpatch, wb, kpatch)
    p = jnp.transpose(p, (0, 1, 3, 5, 2, 4))
    raw_w_mat = p.reshape(B, C * kpatch * kpatch, N)
    y = jnp.einsum("bkn,bnm->bkm", raw_w_mat, score,
                   precision=jax.lax.Precision.HIGHEST)
    y = jnp.transpose(y.reshape(B, C, kpatch, kpatch, H2, W2), (0, 1, 4, 2, 5, 3))
    y = y.reshape(B, C, H2 * kpatch, W2 * kpatch)
    alpha = jnp.asarray(params["alpha"], jnp.float32)
    y = x1 * mask_r + alpha * y * (1.0 - mask_r)

    def leaky(v, s):
        return jnp.where(v >= 0, v, s * v)

    def conv2d(v, w, b, pad, dil=1):
        o = jax.lax.conv_general_dilated(
            v, w, window_strides=(1, 1), padding=((pad, pad), (pad, pad)),
            rhs_dilation=(dil, dil),
            dimension_numbers=("NCHW", "OIHW", "NCHW"),
            precision=jax.lax.Precision.HIGHEST)
        return o + b[None, :, None, None]

    ya = leaky(y, 0.1)
    ybr = jnp.concatenate(
        [conv2d(ya, params["branch_w"][g], params["branch_b"][g],
                pad=rates[g], dil=rates[g]) for g in range(groups)], axis=1)
    cat = jnp.concatenate([x, ybr], axis=1)
    w1 = _spectral_normalize(params["w1"])
    w2 = _spectral_normalize(params["w2"])
    wsc = _spectral_normalize(params["wsc"])
    h = conv2d(leaky(cat, 0.01), w1, params["b1"], pad=1)
    h = conv2d(leaky(h, 0.01), w2, params["b2"], pad=1)
    sc = conv2d(cat, wsc, params["bsc"], pad=0)
    return h + sc


# ---------------------------------------------------------------------------
if __name__ == "__main__":
    B = 2
    C = 16            # AtnConv input_channels
    OC = 8            # AtnConv output_channels
    G = 4             # groups
    H1 = W1 = 16      # x1 (low-level, high-res) spatial
    H2 = W2 = 8       # x2 (high-level, low-res) spatial -> rate = 2
    rates = (1, 2, 4, 8)
    OCg = OC // G
    Cx = 2 * C - OC   # so that concat([x, y]) has 2*C channels (ResBlock input)

    key = jax.random.PRNGKey(0)
    keys = iter(jax.random.split(key, 24))

    def rnd(shape, scale=1.0):
        return scale * jax.random.normal(next(keys), shape, dtype=jnp.float32)

    x1 = rnd((B, C, H1, W1))
    x2 = rnd((B, C, H2, W2))          # only its spatial size is used
    x = rnd((B, Cx, H1, W1))
    mask = jax.random.uniform(next(keys), (B, 1, H2, W2), dtype=jnp.float32)
    rate = W1 // W2
    N = (H1 // rate) * (W1 // rate)
    M = H2 * W2
    score = jax.nn.softmax(rnd((B, N, M)), axis=1)   # attention over patches

    params = {
        # nn.Parameter(torch.zeros(1)) in the module; set nonzero so the
        # attention-transfer path actually contributes to the output.
        "alpha": jnp.float32(0.5),
        "branch_w": [rnd((OCg, C, 3, 3), 0.1) for _ in range(G)],
        "branch_b": [rnd((OCg,), 0.05) for _ in range(G)],
        "w1": rnd((C, 2 * C, 3, 3), 0.1),
        "b1": rnd((C,), 0.05),
        "w2": rnd((C, C, 3, 3), 0.1),
        "b2": rnd((C,), 0.05),
        "wsc": rnd((C, 2 * C, 1, 1), 0.1),
        "bsc": rnd((C,), 0.05),
    }

    ref = _reference(x1, x2, x, mask, score, params,
                     ksize=3, stride=1, rates=rates, groups=G)

    # f32-MXU path: tight numerical check against the reference
    prep32 = prepare_atn_weights(params, groups=G, compute_dtype=jnp.float32)
    out32, attn_mask = atn_conv_forward(x1, x2, x, mask, score, prep32,
                                        ksize=3, stride=1, rates=rates, groups=G)
    out32 = jax.block_until_ready(out32)
    assert out32.shape == (B, C, H1, W1)
    assert attn_mask == 0
    assert jnp.allclose(out32, ref, atol=2e-3, rtol=2e-3), (
        float(jnp.max(jnp.abs(out32 - ref))))

    # bf16-MXU path (recommended on v6e/v7x): looser, relative-L2 check
    prep16 = prepare_atn_weights(params, groups=G, compute_dtype=jnp.bfloat16)
    out16, _ = atn_conv_forward(x1, x2, x, mask, score, prep16,
                                ksize=3, stride=1, rates=rates, groups=G)
    out16 = jax.block_until_ready(out16)
    rel = float(jnp.linalg.norm(out16.astype(jnp.float32) - ref)
                / (jnp.linalg.norm(ref) + 1e-12))
    assert rel < 2e-2, rel

    print("KERNEL_OK")
</pallas_src>

<mosaic_0001>
module attributes {stable_mosaic.version = 11 : i64} {
  func.func @_roll_probe_kernel(%arg0: memref<8x128xf32, #tpu.memory_space<vmem>>, %arg1: memref<8x128xf32, #tpu.memory_space<vmem>>) attributes {dimension_semantics = [], scalar_prefetch = 0 : i64, scratch_operands = 0 : i64, tpu.core_type = #tpu.core_type<tc>} {
    %c0 = arith.constant 0 : index
    %c0_0 = arith.constant 0 : index
    %0 = vector.load %arg0[%c0, %c0_0] : memref<8x128xf32, #tpu.memory_space<vmem>>, vector<8x128xf32>
    %c1_i32 = arith.constant 1 : i32
    %1 = tpu.dynamic_rotate %0 by %c1_i32 dim 1 : vector<8x128xf32>, i32 -> vector<8x128xf32>
    %c0_1 = arith.constant 0 : index
    %c0_2 = arith.constant 0 : index
    %2 = vector.load %arg1[%c0_1, %c0_2] : memref<8x128xf32, #tpu.memory_space<vmem>>, vector<8x128xf32>
    tpu.vector_store %arg1[%c0_1, %c0_2], %1 {strides = array<i32>} : memref<8x128xf32, #tpu.memory_space<vmem>>, vector<8x128xf32>,
    return
  }
}

</mosaic_0001>

<llo_original>
// kernel: tpu_custom_call.1
$region0: #{tpu_custom_call.1}
  #allocation0 [shape = 'u32[]', space=smem, size = 0x4, offset = 0x4, fixed_abs, tag = 'smem constant byte address 0x4 - core index']
  #allocation1 [shape = 'u32[144,128]{1,0:T(1,128)}', space=vmem, size = 0x12000, scoped, tag = 'internal scratch']
  %s0 = inlined_call_operand.hbm [shape: f32[8,128], index: 0, kind: input, shape index: {}]
  %s1 = inlined_call_operand.hbm [shape: f32[8,128], index: 1, kind: output, shape index: {}]
  %s2 = sld [smem:[#allocation0]]
  $region18: #{tpu_custom_call.1} parent=0
    _
  %s4 = ssub.s32 1, %s2
  %s5 = scalar_select 0, %s4, %s2
  $region1: #{tpu_custom_call.1} parent=0
    #allocation2 [shape = 'u8[4096]{0}', space=vmem, size = 0x1000, scoped, tag = 'input window, operand 0, single buffered']
    #allocation3 [shape = 's32[1]{0}', space=sflag, size = 0x4, scoped, tag = 'scoped memory for tpu_custom_call.1']
    #allocation4 [shape = 's32[1]{0}', space=sflag, size = 0x4, scoped, tag = 'scoped memory for tpu_custom_call.1']
    #allocation5 [shape = 'u8[4096]{0}', space=vmem, size = 0x1000, scoped, tag = 'output window, operand 0, single buffered']
    %6 = vsyncpa [#allocation3], 0
    %7 = vsyncpa [#allocation4], 0
    // Predicated region
    $region2: #{tpu_custom_call.1} parent=1 // pred_check
      _
    $region3: #{tpu_custom_call.1} parent=1 // pred_check_branch
      %9 = sbr.rel (0) target = $region5
    $region4: #{tpu_custom_call.1} parent=1 // pred_region
      %s11 = ssub.s32 128, 128
      %12 = vsyncadd [#allocation3], %s11
      %s14 = sshll.u32 [#allocation2], 4
      %s15 = int_to_ptr.vmem [resolvable:$true] %s14
      %17 = dma.hbm_to_vmem [thread:$0]  %s0, 128, %s15, [#allocation3]
    $region5: #{tpu_custom_call.1} parent=1 // pred_fallthru
      _
    // Predicated region
    $region6: #{tpu_custom_call.1} parent=1 // pred_check
      _
    $region7: #{tpu_custom_call.1} parent=1 // pred_check_branch
      %19 = sbr.rel (0) target = $region9
    $region8: #{tpu_custom_call.1} parent=1 // pred_region
      %20 = dma.done [#allocation3], 128
    $region9: #{tpu_custom_call.1} parent=1 // pred_fallthru
      _
    %v21 = vld [vmem:[#allocation2] sm:$0xff]
    %22 = vrot.lane.b32.xlu0 %v21, 1
    %v23 = vpop.permute.xlu0 %22
    %24 = vst [vmem:[#allocation5] sm:$0xff] %v23
    // Predicated region
    $region10: #{tpu_custom_call.1} parent=1 // pred_check
      _
    $region11: #{tpu_custom_call.1} parent=1 // pred_check_branch
      %26 = sbr.rel (0) target = $region13
    $region12: #{tpu_custom_call.1} parent=1 // pred_region
      %s28 = ssub.s32 128, 128
      %29 = vsyncadd [#allocation4], %s28
      %s31 = sshll.u32 [#allocation5], 4
      %s32 = int_to_ptr.vmem [resolvable:$true] %s31
      %34 = dma.vmem_to_hbm [thread:$0]  %s32, 128, %s1, [#allocation4]
    $region13: #{tpu_custom_call.1} parent=1 // pred_fallthru
      _
    // Predicated region
    $region14: #{tpu_custom_call.1} parent=1 // pred_check
      _
    $region15: #{tpu_custom_call.1} parent=1 // pred_check_branch
      %36 = sbr.rel (0) target = $region17
    $region16: #{tpu_custom_call.1} parent=1 // pred_region
      %37 = dma.done [#allocation4], 128
    $region17: #{tpu_custom_call.1} parent=1 // pred_fallthru
      _
    %38 = vsyncpa [#allocation3], 1
    %39 = vsyncpa [#allocation4], 1

</llo_original>
